<compile_context>
chip_gen: v6e
topology: v6e:2x2x1
jax: 0.10.0
libtpu: 0.0.40
codegen_flags: <defaults>
</compile_context>

<pallas_src>
import jax
import jax.numpy as jnp
from jax.experimental import pallas as pl
from jax.experimental.pallas import tpu as pltpu

TAU = 2.0          # LIFNode default
V_THRESHOLD = 1.0  # LIFNode default
V_RESET = 0.0      # LIFNode default; v starts at v_reset after reset_net

# After reset_net, the charge step reduces to v = x / tau and the fire
# condition v >= v_threshold folds into a single compare x >= tau*v_threshold.
# NOTE: the fold is bit-exact only because tau == 2 is a power of two and the
# initial v == v_reset == 0 (decay_input=True).  Keep guarded by those
# assumptions if the constants are ever parameterized.
_FIRE_THRESH = TAU * V_THRESHOLD

_TARGET_BLOCK_BYTES = 4 * 1024 * 1024   # ~4 MiB per block buffer
_VMEM_LIMIT_BYTES = 48 * 1024 * 1024    # > 4x block (dbl-buffered in+out), < 64 MiB/TC (v7x)


def _lif_kernel(x_ref, o_ref):
    # Single VPU compare per vreg; no mul needed (threshold folded above).
    o_ref[...] = (x_ref[...] >= _FIRE_THRESH).astype(o_ref.dtype)


def _round_up(a, m):
    return (a + m - 1) // m * m


def _num_tensorcores():
    """Best-effort TensorCores-per-chip query (v7x: 2, v5e/v6e: 1)."""
    try:
        info = pltpu.get_tpu_info()
        for attr in ("num_cores", "num_tensorcores", "tensor_core_count",
                     "cores_per_chip"):
            v = getattr(info, attr, None)
            if isinstance(v, int) and v > 0:
                return v
    except Exception:
        pass
    return 1


def lif_forward(x):
    """Single-step LIF neuron forward (spike output) on any-rank tensor."""
    orig_shape = x.shape
    dtype = x.dtype

    if not jnp.issubdtype(dtype, jnp.floating):
        # TODO(synk): integer activations are not meaningful for LIFNode; keep
        # x / tau promotion semantics with a plain-JAX fallback.
        return (x / TAU >= V_THRESHOLD).astype(dtype)

    itemsize = jnp.dtype(dtype).itemsize
    # Sublane packing multiple: 8 for 32-bit, 16 for bf16/f16, 32 for 8-bit.
    sub_mult = 8 * max(1, 4 // itemsize)

    flat = x.reshape(-1)
    n = flat.shape[0]
    cores = _num_tensorcores()

    compiler_params = pltpu.CompilerParams(
        # NOTE: on v7x, pltpu.CORE_PARALLEL may shard the grid across both TCs
        # more reliably; "parallel" is kept as the safe cross-generation choice.
        dimension_semantics=("parallel",),
        vmem_limit_bytes=_VMEM_LIMIT_BYTES,
    )
    cost = pl.CostEstimate(flops=n, transcendentals=0,
                           bytes_accessed=2 * n * itemsize)

    if n % 128 == 0:
        # Lane-dense 2-D path: widest multiple-of-128 last dim dividing n, so
        # stores are unmasked full-lane vst and no pad/slice passes are needed.
        lane = 128
        for cand in (4096, 2048, 1024, 512, 256):
            if n % cand == 0:
                lane = cand
                break
        rows = n // lane

        target_rows = max(
            sub_mult,
            (_TARGET_BLOCK_BYTES // (lane * itemsize)) // sub_mult * sub_mult)
        block_rows = min(target_rows, _round_up(rows, sub_mult))
        if cores > 1 and rows > sub_mult:
            # Give each TensorCore at least ~2 blocks so the per-core pipeline
            # has something to overlap (only matters on dual-TC v7x).
            per_core = max(sub_mult,
                           _round_up(pl.cdiv(rows, 2 * cores), sub_mult))
            block_rows = min(block_rows, per_core)

        grid = (pl.cdiv(rows, block_rows),)
        out = pl.pallas_call(
            _lif_kernel,
            out_shape=jax.ShapeDtypeStruct((rows, lane), dtype),
            grid_spec=pltpu.PrefetchScalarGridSpec(
                num_scalar_prefetch=0,
                grid=grid,
                in_specs=[pl.BlockSpec((block_rows, lane), lambda i: (i, 0))],
                out_specs=pl.BlockSpec((block_rows, lane), lambda i: (i, 0)),
            ),
            compiler_params=compiler_params,
            cost_estimate=cost,
        )(flat.reshape(rows, lane))
        return out.reshape(orig_shape)

    # Misaligned path (n % 128 != 0): 1-D grid over the flat array.  Block
    # size is a multiple of sub_mult*128 and Pallas masks the partial last
    # block, so there is no jnp.pad / slice (no extra HBM read+write passes).
    min_block = sub_mult * 128
    if n <= min_block:
        block_n = n                       # single full-array block
    else:
        target = max(min_block,
                     (_TARGET_BLOCK_BYTES // itemsize)
                     // min_block * min_block)
        block_n = min(target, _round_up(n, min_block))
        if cores > 1:
            per_core = max(min_block,
                           _round_up(pl.cdiv(n, 2 * cores), min_block))
            block_n = min(block_n, per_core)

    grid = (pl.cdiv(n, block_n),)
    out = pl.pallas_call(
        _lif_kernel,
        out_shape=jax.ShapeDtypeStruct((n,), dtype),
        grid_spec=pltpu.PrefetchScalarGridSpec(
            num_scalar_prefetch=0,
            grid=grid,
            in_specs=[pl.BlockSpec((block_n,), lambda i: (i,))],
            out_specs=pl.BlockSpec((block_n,), lambda i: (i,)),
        ),
        compiler_params=compiler_params,
        cost_estimate=cost,
    )(flat)
    return out.reshape(orig_shape)


if __name__ == "__main__":
    key = jax.random.PRNGKey(0)

    # Small NCHW input consistent with a conv-style activation tensor.
    x = jax.random.normal(key, (2, 4, 16, 16), dtype=jnp.float32) * 3.0
    out = jax.block_until_ready(lif_forward(x))
    ref = (x / TAU >= V_THRESHOLD).astype(jnp.float32)
    assert out.shape == x.shape
    assert out.dtype == x.dtype
    assert jnp.array_equal(out, ref)

    # Misaligned-size check (exercises the 1-D masked-partial-block path).
    x2 = jax.random.normal(jax.random.PRNGKey(1), (3, 5, 7), dtype=jnp.float32) * 3.0
    out2 = jax.block_until_ready(lif_forward(x2))
    ref2 = (x2 / TAU >= V_THRESHOLD).astype(jnp.float32)
    assert out2.shape == x2.shape
    assert jnp.array_equal(out2, ref2)

    print("KERNEL_OK")
</pallas_src>

<mosaic_0001>
module attributes {stable_mosaic.version = 11 : i64} {
  func.func @_lif_kernel(%arg0: i32, %arg1: memref<8x2048xf32, #tpu.memory_space<vmem>>, %arg2: memref<8x2048xf32, #tpu.memory_space<vmem>>) attributes {dimension_semantics = [#tpu.dimension_semantics<parallel>], iteration_bounds = array<i64: 1>, scalar_prefetch = 0 : i64, scratch_operands = 0 : i64, tpu.core_type = #tpu.core_type<tc>, window_params = [{transform_indices = @transform_0, window_bounds = array<i64: 8, 2048>}, {transform_indices = @transform_1, window_bounds = array<i64: 8, 2048>}]} {
    %c0 = arith.constant 0 : index
    %c0_0 = arith.constant 0 : index
    %0 = vector.load %arg1[%c0, %c0_0] : memref<8x2048xf32, #tpu.memory_space<vmem>>, vector<8x2048xf32>
    %cst = arith.constant 2.000000e+00 : f32
    %1 = vector.broadcast %cst : f32 to vector<8x2048xf32>
    %2 = arith.cmpf oge, %0, %1 : vector<8x2048xf32>
    %3 = arith.extui %2 : vector<8x2048xi1> to vector<8x2048xi32>
    %4 = arith.sitofp %3 : vector<8x2048xi32> to vector<8x2048xf32>
    %c0_1 = arith.constant 0 : index
    %c0_2 = arith.constant 0 : index
    %5 = vector.load %arg2[%c0_1, %c0_2] : memref<8x2048xf32, #tpu.memory_space<vmem>>, vector<8x2048xf32>
    tpu.vector_store %arg2[%c0_1, %c0_2], %4 {strides = array<i32>} : memref<8x2048xf32, #tpu.memory_space<vmem>>, vector<8x2048xf32>,
    return
  }
  func.func @transform_0(%arg0: i32) -> (i32, i32) {
    %c0_i32 = arith.constant 0 : i32
    %c0_i32_0 = arith.constant 0 : i32
    return %arg0, %c0_i32 : i32, i32
  }
  func.func @transform_1(%arg0: i32) -> (i32, i32) {
    %c0_i32 = arith.constant 0 : i32
    %c0_i32_0 = arith.constant 0 : i32
    return %arg0, %c0_i32 : i32, i32
  }
}

</mosaic_0001>

<llo_original>
// kernel: tpu_custom_call.1
$region0: #{tpu_custom_call.1}
  #allocation0 [shape = 'u32[]', space=smem, size = 0x4, offset = 0x4, fixed_abs, tag = 'smem constant byte address 0x4 - core index']
  #allocation1 [shape = 'u32[144,128]{1,0:T(1,128)}', space=vmem, size = 0x12000, scoped, tag = 'internal scratch']
  %s0 = inlined_call_operand.hbm [shape: f32[1,2048], index: 0, kind: input, shape index: {}]
  %s1 = inlined_call_operand.hbm [shape: f32[1,2048], index: 1, kind: output, shape index: {}]
  %s2 = sld [smem:[#allocation0]]
  $region18: #{tpu_custom_call.1} parent=0
    _
  %s4 = ssub.s32 1, %s2
  %s5 = scalar_select 0, %s4, %s2
  $region1: #{tpu_custom_call.1} parent=0
    #allocation2 [shape = 'u8[65536]{0}', space=vmem, size = 0x10000, scoped, tag = 'input window, operand 0, single buffered']
    #allocation3 [shape = 's32[1]{0}', space=sflag, size = 0x4, scoped, tag = 'scoped memory for tpu_custom_call.1']
    #allocation4 [shape = 's32[1]{0}', space=sflag, size = 0x4, scoped, tag = 'scoped memory for tpu_custom_call.1']
    #allocation5 [shape = 'u8[65536]{0}', space=vmem, size = 0x10000, scoped, tag = 'output window, operand 0, single buffered']
    %6 = vsyncpa [#allocation3], 0
    %7 = vsyncpa [#allocation4], 0
    // Predicated region
    $region2: #{tpu_custom_call.1} parent=1 // pred_check
      _
    $region3: #{tpu_custom_call.1} parent=1 // pred_check_branch
      %9 = sbr.rel (0) target = $region5
    $region4: #{tpu_custom_call.1} parent=1 // pred_region
      %s11 = ssub.s32 2048, 256
      %12 = vsyncadd [#allocation3], %s11
      %s13 = sshll.u32 [#allocation2], 4
      %s14 = int_to_ptr.vmem [resolvable:$true] %s13
      %19 = dma.hbm_to_vmem [thread:$0]  %s0, 256, %s14, [#allocation3], 256, 256, 16
    $region5: #{tpu_custom_call.1} parent=1 // pred_fallthru
      _
    // Predicated region
    $region6: #{tpu_custom_call.1} parent=1 // pred_check
      _
    $region7: #{tpu_custom_call.1} parent=1 // pred_check_branch
      %21 = sbr.rel (0) target = $region9
    $region8: #{tpu_custom_call.1} parent=1 // pred_region
      %22 = dma.done [#allocation3], 2048
    $region9: #{tpu_custom_call.1} parent=1 // pred_fallthru
      _
    %v23 = vld [vmem:[#allocation2] sm:$0xff]
    %v24 = vld [vmem:[#allocation2 + $0x8] sm:$0xff]
    %v25 = vld [vmem:[#allocation2 + $0x10] sm:$0xff]
    %v26 = vld [vmem:[#allocation2 + $0x18] sm:$0xff]
    %v27 = vld [vmem:[#allocation2 + $0x20] sm:$0xff]
    %v28 = vld [vmem:[#allocation2 + $0x28] sm:$0xff]
    %v29 = vld [vmem:[#allocation2 + $0x30] sm:$0xff]
    %v30 = vld [vmem:[#allocation2 + $0x38] sm:$0xff]
    %v31 = vld [vmem:[#allocation2 + $0x40] sm:$0xff]
    %v32 = vld [vmem:[#allocation2 + $0x48] sm:$0xff]
    %v33 = vld [vmem:[#allocation2 + $0x50] sm:$0xff]
    %v34 = vld [vmem:[#allocation2 + $0x58] sm:$0xff]
    %v35 = vld [vmem:[#allocation2 + $0x60] sm:$0xff]
    %v36 = vld [vmem:[#allocation2 + $0x68] sm:$0xff]
    %v37 = vld [vmem:[#allocation2 + $0x70] sm:$0xff]
    %v38 = vld [vmem:[#allocation2 + $0x78] sm:$0xff]
    %vm39 = vcmp.ge.f32.partialorder %v23, 2.0
    %vm40 = vcmp.ge.f32.partialorder %v24, 2.0
    %vm41 = vcmp.ge.f32.partialorder %v25, 2.0
    %vm42 = vcmp.ge.f32.partialorder %v26, 2.0
    %vm43 = vcmp.ge.f32.partialorder %v27, 2.0
    %vm44 = vcmp.ge.f32.partialorder %v28, 2.0
    %vm45 = vcmp.ge.f32.partialorder %v29, 2.0
    %vm46 = vcmp.ge.f32.partialorder %v30, 2.0
    %vm47 = vcmp.ge.f32.partialorder %v31, 2.0
    %vm48 = vcmp.ge.f32.partialorder %v32, 2.0
    %vm49 = vcmp.ge.f32.partialorder %v33, 2.0
    %vm50 = vcmp.ge.f32.partialorder %v34, 2.0
    %vm51 = vcmp.ge.f32.partialorder %v35, 2.0
    %vm52 = vcmp.ge.f32.partialorder %v36, 2.0
    %vm53 = vcmp.ge.f32.partialorder %v37, 2.0
    %vm54 = vcmp.ge.f32.partialorder %v38, 2.0
    %v55 = vsel %vm39, 1, 0
    %v56 = vsel %vm40, 1, 0
    %v57 = vsel %vm41, 1, 0
    %v58 = vsel %vm42, 1, 0
    %v59 = vsel %vm43, 1, 0
    %v60 = vsel %vm44, 1, 0
    %v61 = vsel %vm45, 1, 0
    %v62 = vsel %vm46, 1, 0
    %v63 = vsel %vm47, 1, 0
    %v64 = vsel %vm48, 1, 0
    %v65 = vsel %vm49, 1, 0
    %v66 = vsel %vm50, 1, 0
    %v67 = vsel %vm51, 1, 0
    %v68 = vsel %vm52, 1, 0
    %v69 = vsel %vm53, 1, 0
    %v70 = vsel %vm54, 1, 0
    %v71 = vcvt.s32.f32 %v55
    %v72 = vcvt.s32.f32 %v56
    %v73 = vcvt.s32.f32 %v57
    %v74 = vcvt.s32.f32 %v58
    %v75 = vcvt.s32.f32 %v59
    %v76 = vcvt.s32.f32 %v60
    %v77 = vcvt.s32.f32 %v61
    %v78 = vcvt.s32.f32 %v62
    %v79 = vcvt.s32.f32 %v63
    %v80 = vcvt.s32.f32 %v64
    %v81 = vcvt.s32.f32 %v65
    %v82 = vcvt.s32.f32 %v66
    %v83 = vcvt.s32.f32 %v67
    %v84 = vcvt.s32.f32 %v68
    %v85 = vcvt.s32.f32 %v69
    %v86 = vcvt.s32.f32 %v70
    %87 = vst [vmem:[#allocation5] sm:$0xff] %v71
    %88 = vst [vmem:[#allocation5 + $0x8] sm:$0xff] %v72
    %89 = vst [vmem:[#allocation5 + $0x10] sm:$0xff] %v73
    %90 = vst [vmem:[#allocation5 + $0x18] sm:$0xff] %v74
    %91 = vst [vmem:[#allocation5 + $0x20] sm:$0xff] %v75
    %92 = vst [vmem:[#allocation5 + $0x28] sm:$0xff] %v76
    %93 = vst [vmem:[#allocation5 + $0x30] sm:$0xff] %v77
    %94 = vst [vmem:[#allocation5 + $0x38] sm:$0xff] %v78
    %95 = vst [vmem:[#allocation5 + $0x40] sm:$0xff] %v79
    %96 = vst [vmem:[#allocation5 + $0x48] sm:$0xff] %v80
    %97 = vst [vmem:[#allocation5 + $0x50] sm:$0xff] %v81
    %98 = vst [vmem:[#allocation5 + $0x58] sm:$0xff] %v82
    %99 = vst [vmem:[#allocation5 + $0x60] sm:$0xff] %v83
    %100 = vst [vmem:[#allocation5 + $0x68] sm:$0xff] %v84
    %101 = vst [vmem:[#allocation5 + $0x70] sm:$0xff] %v85
    %102 = vst [vmem:[#allocation5 + $0x78] sm:$0xff] %v86
    // Predicated region
    $region10: #{tpu_custom_call.1} parent=1 // pred_check
      _
    $region11: #{tpu_custom_call.1} parent=1 // pred_check_branch
      %104 = sbr.rel (0) target = $region13
    $region12: #{tpu_custom_call.1} parent=1 // pred_region
      %s106 = ssub.s32 2048, 256
      %107 = vsyncadd [#allocation4], %s106
      %s108 = sshll.u32 [#allocation5], 4
      %s109 = int_to_ptr.vmem [resolvable:$true] %s108
      %114 = dma.vmem_to_hbm [thread:$0]  %s109, 256, %s1, [#allocation4], 256, 256, 16
    $region13: #{tpu_custom_call.1} parent=1 // pred_fallthru
      _
    // Predicated region
    $region14: #{tpu_custom_call.1} parent=1 // pred_check
      _
    $region15: #{tpu_custom_call.1} parent=1 // pred_check_branch
      %116 = sbr.rel (0) target = $region17
    $region16: #{tpu_custom_call.1} parent=1 // pred_region
      %117 = dma.done [#allocation4], 2048
    $region17: #{tpu_custom_call.1} parent=1 // pred_fallthru
      _
    %118 = vsyncpa [#allocation3], 1
    %119 = vsyncpa [#allocation4], 1

</llo_original>
